<compile_context>
chip_gen: v6e
topology: v6e:2x2x1
jax: 0.10.0
libtpu: 0.0.40
codegen_flags: <defaults>
</compile_context>

<pallas_src>
import functools

import jax
import jax.numpy as jnp
from jax import lax
from jax.experimental import pallas as pl
from jax.experimental.pallas import tpu as pltpu


# ---------------------------------------------------------------------------
# Kernel A: small / medium vocab — VMEM-resident table, one-hot MXU gather.
# ---------------------------------------------------------------------------
def _bigram_mxu_kernel(ids_ref, tgt_ref, table_ref, logits_ref, loss_ref,
                       *, tile_n, v_pad, vocab, n_valid, compute_loss):
    """One grid step handles `tile_n` flattened token positions.

    ids_ref    : (tile_n, 1) int32 VMEM block
    tgt_ref    : (tile_n, 1) int32 VMEM block (zeros on the inference path)
    table_ref  : (v_pad, v_pad) f32, grid-invariant VMEM block
    logits_ref : (tile_n, v_pad) f32 output tile (lane-dense)
    loss_ref   : (8, 128) f32 per-tile partial CE sum (broadcast scalar)
    """
    t = pl.program_id(0)
    base = t * tile_n

    # ---- Vectorized embedding gather on the MXU ----------------------------
    ids = jnp.clip(ids_ref[...], 0, vocab - 1)                      # (tile_n, 1)
    lane = lax.broadcasted_iota(jnp.int32, (tile_n, v_pad), 1)       # (tile_n, v_pad)
    onehot = (lane == ids).astype(jnp.float32)
    # f32 one-hot x f32 table with f32 accumulation: exact row selection.
    logits = jnp.dot(onehot, table_ref[...],
                     preferred_element_type=jnp.float32)             # (tile_n, v_pad)
    logits_ref[...] = logits

    # ---- Cross-entropy (training path only) --------------------------------
    if compute_loss:
        row = lax.broadcasted_iota(jnp.int32, (tile_n, 1), 0) + base
        valid = row < n_valid                                        # (tile_n, 1)
        masked = jnp.where(lane < vocab, logits, jnp.float32(-1e30)) # pad cols out
        m = jnp.max(masked, axis=-1, keepdims=True)
        lse = jnp.log(jnp.sum(jnp.exp(masked - m), axis=-1, keepdims=True)) + m

        tgt = jnp.clip(tgt_ref[...], 0, vocab - 1)                   # (tile_n, 1)
        tgt_hit = (lane == tgt) & valid                               # (tile_n, v_pad)
        partial = (jnp.sum(jnp.where(valid, lse, 0.0))
                   - jnp.sum(jnp.where(tgt_hit, logits, 0.0)))
        loss_ref[...] = jnp.zeros((8, 128), jnp.float32) + partial
    else:
        loss_ref[...] = jnp.zeros((8, 128), jnp.float32)


# ---------------------------------------------------------------------------
# Kernel B: large vocab — table stays in HBM, per-row DMA gather.
# ---------------------------------------------------------------------------
def _bigram_hbm_kernel(ids_ref, tgt_ref, table_hbm, logits_ref, loss_ref, sems,
                       *, tile_n, v_pad, vocab, n_valid, compute_loss, nsem):
    """ids_ref is a scalar-prefetched SMEM array (whole flattened sequence);
    table_hbm is a raw HBM ref (memory_space=pl.ANY).  Rows are DMA-gathered
    directly into the pipelined logits output tile, `nsem` copies in flight.
    """
    t = pl.program_id(0)
    base = t * tile_n
    num_groups = tile_n // nsem

    def group(g, carry):
        def issue(i, c):
            n = g * nsem + i
            token = jnp.clip(ids_ref[base + n], 0, vocab - 1)
            pltpu.make_async_copy(table_hbm.at[pl.ds(token, 1), :],
                                  logits_ref.at[pl.ds(n, 1), :],
                                  sems.at[i]).start()
            return c

        lax.fori_loop(0, nsem, issue, 0, unroll=True)

        def wait(i, c):
            n = g * nsem + i
            pltpu.make_async_copy(table_hbm.at[pl.ds(0, 1), :],
                                  logits_ref.at[pl.ds(n, 1), :],
                                  sems.at[i]).wait()
            return c

        lax.fori_loop(0, nsem, wait, 0, unroll=True)
        return carry

    lax.fori_loop(0, num_groups, group, 0)

    if compute_loss:
        logits = logits_ref[...]                                      # (tile_n, v_pad)
        lane = lax.broadcasted_iota(jnp.int32, (tile_n, v_pad), 1)
        row = lax.broadcasted_iota(jnp.int32, (tile_n, 1), 0) + base
        valid = row < n_valid
        masked = jnp.where(lane < vocab, logits, jnp.float32(-1e30))
        m = jnp.max(masked, axis=-1, keepdims=True)
        lse = jnp.log(jnp.sum(jnp.exp(masked - m), axis=-1, keepdims=True)) + m

        tgt = jnp.clip(tgt_ref[...], 0, vocab - 1)
        tgt_hit = (lane == tgt) & valid
        partial = (jnp.sum(jnp.where(valid, lse, 0.0))
                   - jnp.sum(jnp.where(tgt_hit, logits, 0.0)))
        loss_ref[...] = jnp.zeros((8, 128), jnp.float32) + partial
    else:
        loss_ref[...] = jnp.zeros((8, 128), jnp.float32)


# ---------------------------------------------------------------------------
# Host wrapper
# ---------------------------------------------------------------------------
def _round_up(x, m):
    return (x + m - 1) // m * m


def bigram_forward(tokens, table, targets=None, *, force_hbm_table=False):
    """Pallas equivalent of BigramLanguageModel.forward.

    tokens:  (B, T) int32
    table:   (V, V) float32 embedding table
    targets: optional (B, T) int32

    Returns (logits, loss). If targets is None, logits has shape (B, T, V)
    and loss is None (matching the PyTorch module); otherwise logits is
    (B*T, V) and loss is a scalar.
    """
    B, T = tokens.shape
    V = table.shape[0]
    N = B * T
    V_pad = _round_up(V, 128)
    compute_loss = targets is not None

    # ---- Host-side padding (lane-dense V, sublane-aligned N) ---------------
    table_f32 = table.astype(jnp.float32)
    if V_pad != V:
        table_pad = jnp.zeros((V_pad, V_pad), jnp.float32).at[:V, :V].set(table_f32)
    else:
        table_pad = table_f32

    # tile_n: keep 2 * tile_n * V_pad * 4 B (double-buffered output) ~<= 8 MiB,
    # prefer >=512 rows (HBM roofline), 8-row multiples, don't over-pad tiny N.
    tile_n = min(512, max(8, ((1 << 20) // V_pad) // 8 * 8))
    tile_n = min(tile_n, _round_up(N, 8))
    tile_n = max(8, (tile_n // 8) * 8)
    n_pad = _round_up(N, tile_n)
    num_tiles = n_pad // tile_n

    ids_pad = jnp.zeros((n_pad,), jnp.int32).at[:N].set(
        tokens.reshape(-1).astype(jnp.int32))
    if targets is None:
        tgt_pad = jnp.zeros((n_pad,), jnp.int32)
    else:
        tgt_pad = jnp.zeros((n_pad,), jnp.int32).at[:N].set(
            targets.reshape(-1).astype(jnp.int32))
    ids_2d = ids_pad.reshape(n_pad, 1)
    tgt_2d = tgt_pad.reshape(n_pad, 1)

    # ---- Path selection: resident table (MXU gather) vs HBM DMA gather -----
    table_bytes = V_pad * V_pad * 4
    out_tile_bytes = 2 * tile_n * V_pad * 4          # double-buffered output
    # Conservative budget so the resident path also fits v7x's 64 MiB VMEM
    # (table potentially double-buffered by the pipeline).
    # TODO(synk): pipeline_mode=pl.Buffered(1) on the invariant table would
    # halve its footprint and roughly double this threshold.
    resident_ok = (not force_hbm_table) and (
        2 * table_bytes + out_tile_bytes + (2 << 20) <= 40 * 1024 * 1024)

    out_shape = (
        jax.ShapeDtypeStruct((n_pad, V_pad), jnp.float32),
        jax.ShapeDtypeStruct((num_tiles * 8, 128), jnp.float32),
    )

    if resident_ok:
        vmem_need = (2 * table_bytes + out_tile_bytes
                     + 4 * tile_n * 4 * 2 + 2 * 8 * 128 * 4 + (2 << 20))
        kernel = functools.partial(
            _bigram_mxu_kernel, tile_n=tile_n, v_pad=V_pad, vocab=V,
            n_valid=N, compute_loss=compute_loss)
        logits_pad, loss_part = pl.pallas_call(
            kernel,
            out_shape=out_shape,
            grid_spec=pltpu.PrefetchScalarGridSpec(
                num_scalar_prefetch=0,
                grid=(num_tiles,),
                in_specs=[
                    pl.BlockSpec((tile_n, 1), lambda t: (t, 0)),   # ids
                    pl.BlockSpec((tile_n, 1), lambda t: (t, 0)),   # targets
                    pl.BlockSpec((V_pad, V_pad), lambda t: (0, 0)),  # table (invariant)
                ],
                out_specs=(
                    pl.BlockSpec((tile_n, V_pad), lambda t: (t, 0)),
                    pl.BlockSpec((8, 128), lambda t: (t, 0)),
                ),
            ),
            compiler_params=pltpu.CompilerParams(
                dimension_semantics=("parallel",),
                vmem_limit_bytes=int(min(60 * 2**20, max(32 * 2**20, vmem_need))),
            ),
        )(ids_2d, tgt_2d, table_pad)
    else:
        nsem = 8
        vmem_need = out_tile_bytes + 4 * tile_n * 4 + 2 * 8 * 128 * 4 + (2 << 20)
        kernel = functools.partial(
            _bigram_hbm_kernel, tile_n=tile_n, v_pad=V_pad, vocab=V,
            n_valid=N, compute_loss=compute_loss, nsem=nsem)
        logits_pad, loss_part = pl.pallas_call(
            kernel,
            out_shape=out_shape,
            grid_spec=pltpu.PrefetchScalarGridSpec(
                num_scalar_prefetch=1,            # ids land in SMEM for addressing
                grid=(num_tiles,),
                in_specs=[
                    pl.BlockSpec((tile_n, 1), lambda t, ids: (t, 0)),   # targets
                    pl.BlockSpec(memory_space=pl.ANY),                  # table in HBM
                ],
                out_specs=(
                    pl.BlockSpec((tile_n, V_pad), lambda t, ids: (t, 0)),
                    pl.BlockSpec((8, 128), lambda t, ids: (t, 0)),
                ),
                scratch_shapes=[pltpu.SemaphoreType.DMA((nsem,))],
            ),
            compiler_params=pltpu.CompilerParams(
                dimension_semantics=("arbitrary",),
                vmem_limit_bytes=int(min(60 * 2**20, max(32 * 2**20, vmem_need))),
            ),
        )(ids_pad, tgt_2d, table_pad)

    logits = logits_pad[:N, :V]
    if targets is None:
        return logits.reshape(B, T, V), None
    partials = loss_part.reshape(num_tiles, 8, 128)[:, 0, 0]
    loss = jnp.sum(partials) / jnp.float32(N)
    return logits, loss


# TODO(synk): generate() (autoregressive multinomial sampling loop) is host-side
# control flow around forward(); not translated to a kernel here.


def _reference_forward(tokens, table, targets):
    logits = table[tokens.reshape(-1)]                  # (N, V)
    tgt = targets.reshape(-1)
    lse = jax.nn.logsumexp(logits, axis=-1)
    nll = lse - logits[jnp.arange(logits.shape[0]), tgt]
    return logits, jnp.mean(nll)


if __name__ == "__main__":
    key = jax.random.PRNGKey(0)
    k_tab, k_tok, k_tgt = jax.random.split(key, 3)

    vocab_size = 65    # not a multiple of 128 -> exercises the V padding path
    B, T = 2, 8        # small batch / sequence

    # nn.Embedding default init ~ N(0, 1)
    table = jax.random.normal(k_tab, (vocab_size, vocab_size), dtype=jnp.float32)
    tokens = jax.random.randint(k_tok, (B, T), 0, vocab_size, dtype=jnp.int32)
    targets = jax.random.randint(k_tgt, (B, T), 0, vocab_size, dtype=jnp.int32)

    ref_logits, ref_loss = _reference_forward(tokens, table, targets)

    # 1) Resident-table (one-hot MXU gather) training path.
    logits, loss = bigram_forward(tokens, table, targets)
    jax.block_until_ready((logits, loss))
    assert logits.shape == (B * T, vocab_size)
    assert jnp.allclose(logits, ref_logits, atol=1e-5, rtol=1e-5)
    assert jnp.allclose(loss, ref_loss, atol=1e-5, rtol=1e-5)

    # 2) Inference path (targets=None): logits only, loss is None.
    logits_only, no_loss = bigram_forward(tokens, table, None)
    jax.block_until_ready(logits_only)
    assert no_loss is None and logits_only.shape == (B, T, vocab_size)
    assert jnp.allclose(logits_only.reshape(B * T, vocab_size), ref_logits,
                        atol=1e-5, rtol=1e-5)

    # 3) Large-vocab fallback (HBM table + per-row DMA gather), forced at
    #    small shapes to verify it compiles and matches.
    logits_h, loss_h = bigram_forward(tokens, table, targets, force_hbm_table=True)
    jax.block_until_ready((logits_h, loss_h))
    assert jnp.allclose(logits_h, ref_logits, atol=1e-5, rtol=1e-5)
    assert jnp.allclose(loss_h, ref_loss, atol=1e-5, rtol=1e-5)

    print("KERNEL_OK")
</pallas_src>

<mosaic_0001>
module attributes {stable_mosaic.version = 11 : i64} {
  func.func @_bigram_mxu_kernel(%arg0: i32, %arg1: memref<16x1xi32, #tpu.memory_space<vmem>>, %arg2: memref<16x1xi32, #tpu.memory_space<vmem>>, %arg3: memref<128x128xf32, #tpu.memory_space<vmem>>, %arg4: memref<16x128xf32, #tpu.memory_space<vmem>>, %arg5: memref<8x128xf32, #tpu.memory_space<vmem>>) attributes {dimension_semantics = [#tpu.dimension_semantics<parallel>], iteration_bounds = array<i64: 1>, scalar_prefetch = 0 : i64, scratch_operands = 0 : i64, tpu.core_type = #tpu.core_type<tc>, window_params = [{transform_indices = @transform_0, window_bounds = array<i64: 16, 1>}, {transform_indices = @transform_1, window_bounds = array<i64: 16, 1>}, {pipeline_mode = #tpu.pipeline_mode<synchronous>, transform_indices = @transform_2, window_bounds = array<i64: 128, 128>}, {transform_indices = @transform_3, window_bounds = array<i64: 16, 128>}, {transform_indices = @transform_4, window_bounds = array<i64: 8, 128>}]} {
    %c16_i32 = arith.constant 16 : i32
    %0 = arith.muli %arg0, %c16_i32 : i32
    %c0 = arith.constant 0 : index
    %c0_0 = arith.constant 0 : index
    %1 = vector.load %arg1[%c0, %c0_0] : memref<16x1xi32, #tpu.memory_space<vmem>>, vector<16x1xi32>
    %c0_i32 = arith.constant 0 : i32
    %c64_i32 = arith.constant 64 : i32
    %2 = vector.broadcast %c0_i32 : i32 to vector<16x1xi32>
    %3 = arith.maxsi %2, %1 : vector<16x1xi32>
    %4 = vector.broadcast %c64_i32 : i32 to vector<16x1xi32>
    %5 = arith.minsi %4, %3 : vector<16x1xi32>
    %6 = tpu.iota {dimensions = array<i32: 1>} : vector<16x128xi32>
    %7 = vector.broadcast %5 : vector<16x1xi32> to vector<16x128xi32>
    %8 = arith.cmpi eq, %6, %7 : vector<16x128xi32>
    %9 = arith.extui %8 : vector<16x128xi1> to vector<16x128xi32>
    %10 = arith.sitofp %9 : vector<16x128xi32> to vector<16x128xf32>
    %c0_1 = arith.constant 0 : index
    %c0_2 = arith.constant 0 : index
    %11 = vector.load %arg3[%c0_1, %c0_2] : memref<128x128xf32, #tpu.memory_space<vmem>>, vector<128x128xf32>
    %cst = arith.constant dense<0.000000e+00> : vector<16x128xf32>
    %12 = tpu.matmul %10, %11, %cst {dimension_numbers = #tpu.dot_dimension_numbers<[1], [0], [0], [1], [0, 0, 1, 1], [], []>} : vector<16x128xf32>, vector<128x128xf32>, vector<16x128xf32> -> vector<16x128xf32>
    %c0_3 = arith.constant 0 : index
    %c0_4 = arith.constant 0 : index
    %13 = vector.load %arg4[%c0_3, %c0_4] : memref<16x128xf32, #tpu.memory_space<vmem>>, vector<16x128xf32>
    tpu.vector_store %arg4[%c0_3, %c0_4], %12 {strides = array<i32>} : memref<16x128xf32, #tpu.memory_space<vmem>>, vector<16x128xf32>,
    %14 = tpu.iota {dimensions = array<i32: 0>} : vector<16x1xi32>
    %15 = vector.broadcast %0 : i32 to vector<16x1xi32>
    %16 = arith.addi %14, %15 : vector<16x1xi32>
    %c16_i32_5 = arith.constant 16 : i32
    %17 = vector.broadcast %c16_i32_5 : i32 to vector<16x1xi32>
    %18 = arith.cmpi slt, %16, %17 : vector<16x1xi32>
    %c65_i32 = arith.constant 65 : i32
    %19 = vector.broadcast %c65_i32 : i32 to vector<16x128xi32>
    %20 = arith.cmpi slt, %6, %19 : vector<16x128xi32>
    %cst_6 = arith.constant -1.000000e+30 : f32
    %21 = vector.broadcast %cst_6 : f32 to vector<16x128xf32>
    %22 = arith.select %20, %12, %21 : vector<16x128xi1>, vector<16x128xf32>
    %cst_7 = arith.constant dense<0xFF800000> : vector<16xf32>
    %23 = vector.multi_reduction <maximumf>, %22, %cst_7 [1] : vector<16x128xf32> to vector<16xf32>
    %24 = vector.shape_cast %23 : vector<16xf32> to vector<16x1xf32>
    %25 = vector.broadcast %24 : vector<16x1xf32> to vector<16x128xf32>
    %26 = arith.subf %22, %25 : vector<16x128xf32>
    %27 = math.exp %26 : vector<16x128xf32>
    %cst_8 = arith.constant dense<0.000000e+00> : vector<16xf32>
    %28 = vector.multi_reduction <add>, %27, %cst_8 [1] : vector<16x128xf32> to vector<16xf32>
    %29 = vector.shape_cast %28 : vector<16xf32> to vector<16x1xf32>
    %30 = math.log %29 : vector<16x1xf32>
    %31 = arith.addf %30, %24 : vector<16x1xf32>
    %c0_9 = arith.constant 0 : index
    %c0_10 = arith.constant 0 : index
    %32 = vector.load %arg2[%c0_9, %c0_10] : memref<16x1xi32, #tpu.memory_space<vmem>>, vector<16x1xi32>
    %c0_i32_11 = arith.constant 0 : i32
    %c64_i32_12 = arith.constant 64 : i32
    %33 = vector.broadcast %c0_i32_11 : i32 to vector<16x1xi32>
    %34 = arith.maxsi %33, %32 : vector<16x1xi32>
    %35 = vector.broadcast %c64_i32_12 : i32 to vector<16x1xi32>
    %36 = arith.minsi %35, %34 : vector<16x1xi32>
    %37 = vector.broadcast %36 : vector<16x1xi32> to vector<16x128xi32>
    %38 = arith.cmpi eq, %6, %37 : vector<16x128xi32>
    %39 = vector.broadcast %18 : vector<16x1xi1> to vector<16x128xi1>
    %40 = arith.andi %38, %39 : vector<16x128xi1>
    %cst_13 = arith.constant 0.000000e+00 : f32
    %41 = vector.broadcast %cst_13 : f32 to vector<16x1xf32>
    %42 = arith.select %18, %31, %41 : vector<16x1xi1>, vector<16x1xf32>
    %43 = vector.shape_cast %42 : vector<16x1xf32> to vector<1x16x1xf32>
    %cst_14 = arith.constant dense<0.000000e+00> : vector<1xf32>
    %44 = vector.multi_reduction <add>, %43, %cst_14 [1, 2] : vector<1x16x1xf32> to vector<1xf32>
    %45 = vector.shape_cast %44 : vector<1xf32> to vector<1x1x1xf32>
    %46 = vector.extract %45[0, 0, 0] : f32 from vector<1x1x1xf32>
    %cst_15 = arith.constant 0.000000e+00 : f32
    %47 = vector.broadcast %cst_15 : f32 to vector<16x128xf32>
    %48 = arith.select %40, %12, %47 : vector<16x128xi1>, vector<16x128xf32>
    %49 = vector.shape_cast %48 : vector<16x128xf32> to vector<1x16x128xf32>
    %cst_16 = arith.constant dense<0.000000e+00> : vector<1xf32>
    %50 = vector.multi_reduction <add>, %49, %cst_16 [1, 2] : vector<1x16x128xf32> to vector<1xf32>
    %51 = vector.shape_cast %50 : vector<1xf32> to vector<1x1x1xf32>
    %52 = vector.extract %51[0, 0, 0] : f32 from vector<1x1x1xf32>
    %53 = arith.subf %46, %52 : f32
    %cst_17 = arith.constant 0.000000e+00 : f32
    %54 = vector.broadcast %cst_17 : f32 to vector<8x128xf32>
    %55 = vector.broadcast %53 : f32 to vector<8x128xf32>
    %56 = arith.addf %54, %55 : vector<8x128xf32>
    %c0_18 = arith.constant 0 : index
    %c0_19 = arith.constant 0 : index
    %57 = vector.load %arg5[%c0_18, %c0_19] : memref<8x128xf32, #tpu.memory_space<vmem>>, vector<8x128xf32>
    tpu.vector_store %arg5[%c0_18, %c0_19], %56 {strides = array<i32>} : memref<8x128xf32, #tpu.memory_space<vmem>>, vector<8x128xf32>,
    return
  }
  func.func @transform_0(%arg0: i32) -> (i32, i32) {
    %c0_i32 = arith.constant 0 : i32
    %c0_i32_0 = arith.constant 0 : i32
    return %arg0, %c0_i32 : i32, i32
  }
  func.func @transform_1(%arg0: i32) -> (i32, i32) {
    %c0_i32 = arith.constant 0 : i32
    %c0_i32_0 = arith.constant 0 : i32
    return %arg0, %c0_i32 : i32, i32
  }
  func.func @transform_2(%arg0: i32) -> (i32, i32) {
    %c0_i32 = arith.constant 0 : i32
    %c0_i32_0 = arith.constant 0 : i32
    %c0_i32_1 = arith.constant 0 : i32
    return %c0_i32, %c0_i32_0 : i32, i32
  }
  func.func @transform_3(%arg0: i32) -> (i32, i32) {
    %c0_i32 = arith.constant 0 : i32
    %c0_i32_0 = arith.constant 0 : i32
    return %arg0, %c0_i32 : i32, i32
  }
  func.func @transform_4(%arg0: i32) -> (i32, i32) {
    %c0_i32 = arith.constant 0 : i32
    %c0_i32_0 = arith.constant 0 : i32
    return %arg0, %c0_i32 : i32, i32
  }
}

</mosaic_0001>

<llo_original>
// kernel: tpu_custom_call.1
$region0: #{tpu_custom_call.1}
  #allocation0 [shape = 'u32[]', space=smem, size = 0x4, offset = 0x4, fixed_abs, tag = 'smem constant byte address 0x4 - core index']
  #allocation1 [shape = 'u32[144,128]{1,0:T(1,128)}', space=vmem, size = 0x12000, scoped, tag = 'internal scratch']
  %s0 = inlined_call_operand.vmem [shape: s32[16,1], index: 0, kind: input, shape index: {}]
  %s1 = inlined_call_operand.vmem [shape: s32[16,1], index: 1, kind: input, shape index: {}]
  %s2 = inlined_call_operand.hbm [shape: f32[128,128], index: 2, kind: input, shape index: {}]
  %s3 = inlined_call_operand.hbm [shape: f32[16,128], index: 3, kind: output, shape index: {0}]
  %s4 = inlined_call_operand.hbm [shape: f32[8,128], index: 4, kind: output, shape index: {1}]
  %5 = xla_tuple %s3, %s4
  %s6 = sld [smem:[#allocation0]]
  $region34: #{tpu_custom_call.1} parent=0
    _
  %s8 = ssub.s32 1, %s6
  %s9 = scalar_select 0, %s8, %s6
  $region1: #{tpu_custom_call.1} parent=0
    #allocation2 [shape = 'u8[65536]{0}', space=vmem, size = 0x10000, scoped, tag = 'input window, operand 2, single buffered']
    #allocation3 [shape = 's32[1]{0}', space=sflag, size = 0x4, scoped, tag = 'scoped memory for tpu_custom_call.1']
    #allocation4 [shape = 's32[1]{0}', space=sflag, size = 0x4, scoped, tag = 'scoped memory for tpu_custom_call.1']
    #allocation5 [shape = 'u8[8192]{0}', space=vmem, size = 0x2000, scoped, tag = 'output window, operand 0, single buffered']
    #allocation6 [shape = 'u8[4096]{0}', space=vmem, size = 0x1000, scoped, tag = 'output window, operand 1, single buffered']
    #allocation7 [shape = 's32[1]{0}', space=sflag, size = 0x4, scoped, tag = 'scoped memory for tpu_custom_call.1']
    %10 = vsyncpa [#allocation3], 0
    %11 = vsyncpa [#allocation4], 0
    %12 = vsyncpa [#allocation7], 0
    // Predicated region
    $region2: #{tpu_custom_call.1} parent=1 // pred_check
      _
    $region3: #{tpu_custom_call.1} parent=1 // pred_check_branch
      %14 = sbr.rel (0) target = $region5
    $region4: #{tpu_custom_call.1} parent=1 // pred_region
      _
    $region5: #{tpu_custom_call.1} parent=1 // pred_fallthru
      _
    // Predicated region
    $region6: #{tpu_custom_call.1} parent=1 // pred_check
      _
    $region7: #{tpu_custom_call.1} parent=1 // pred_check_branch
      %16 = sbr.rel (0) target = $region9
    $region8: #{tpu_custom_call.1} parent=1 // pred_region
      _
    $region9: #{tpu_custom_call.1} parent=1 // pred_fallthru
      _
    // Predicated region
    $region10: #{tpu_custom_call.1} parent=1 // pred_check
      _
    $region11: #{tpu_custom_call.1} parent=1 // pred_check_branch
      %18 = sbr.rel (0) target = $region13
    $region12: #{tpu_custom_call.1} parent=1 // pred_region
      %s20 = ssub.s32 2048, 2048
      %21 = vsyncadd [#allocation3], %s20
      %s22 = sshll.u32 [#allocation2], 4
      %s23 = int_to_ptr.vmem [resolvable:$true] %s22
      %28 = dma.hbm_to_vmem [thread:$0]  %s2, 2048, %s23, [#allocation3], 128, 128, 8
    $region13: #{tpu_custom_call.1} parent=1 // pred_fallthru
      _
    // Predicated region
    $region14: #{tpu_custom_call.1} parent=1 // pred_check
      _
    $region15: #{tpu_custom_call.1} parent=1 // pred_check_branch
      %30 = sbr.rel (0) target = $region17
    $region16: #{tpu_custom_call.1} parent=1 // pred_region
      %31 = dma.done [#allocation3], 2048
    $region17: #{tpu_custom_call.1} parent=1 // pred_fallthru
      _
    %s32 = smul.u32 0, 16
    %v33 = vld [vmem:[%s0] sm:$0xff]
    %v34 = vld [vmem:[%s0 + $0x8] sm:$0xff]
    %vm35 = vcmp.gt.s32.totalorder %v33, 0
    %v36 = vsel %vm35, %v33, 0
    %vm37 = vcmp.gt.s32.totalorder %v34, 0
    %v38 = vsel %vm37, %v34, 0
    %vm39 = vcmp.lt.s32.totalorder %v36, 64
    %v40 = vsel %vm39, %v36, 64
    %vm41 = vcmp.lt.s32.totalorder %v38, 64
    %v42 = vsel %vm41, %v38, 64
    %v43 = vlaneseq
    %v44 = vand.u32 %v43, 127
    %45 = vset.pattern.permute.xlu0 0
    %46 = vperm.xlu0 %45, %v40
    %v47 = vpop.permute.xlu0 %46
    %48 = vset.pattern.permute.xlu0 0
    %49 = vperm.xlu0 %48, %v42
    %v50 = vpop.permute.xlu0 %49
    %vm51 = vcmp.eq.s32.totalorder %v44, %v47
    %vm52 = vcmp.eq.s32.totalorder %v44, %v50
    %v53 = vsel %vm51, 1, 0
    %v54 = vsel %vm52, 1, 0
    %v55 = vcvt.s32.f32 %v53
    %v56 = vcvt.s32.f32 %v54
    %v57 = vld [vmem:[#allocation2] sm:$0xff]
    %v58 = vld [vmem:[#allocation2 + $0x8] sm:$0xff]
    %v59 = vld [vmem:[#allocation2 + $0x10] sm:$0xff]
    %v60 = vld [vmem:[#allocation2 + $0x18] sm:$0xff]
    %v61 = vld [vmem:[#allocation2 + $0x20] sm:$0xff]
    %v62 = vld [vmem:[#allocation2 + $0x28] sm:$0xff]
    %v63 = vld [vmem:[#allocation2 + $0x30] sm:$0xff]
    %v64 = vld [vmem:[#allocation2 + $0x38] sm:$0xff]
    %v65 = vld [vmem:[#allocation2 + $0x40] sm:$0xff]
    %v66 = vld [vmem:[#allocation2 + $0x48] sm:$0xff]
    %v67 = vld [vmem:[#allocation2 + $0x50] sm:$0xff]
    %v68 = vld [vmem:[#allocation2 + $0x58] sm:$0xff]
    %v69 = vld [vmem:[#allocation2 + $0x60] sm:$0xff]
    %v70 = vld [vmem:[#allocation2 + $0x68] sm:$0xff]
    %v71 = vld [vmem:[#allocation2 + $0x70] sm:$0xff]
    %v72 = vld [vmem:[#allocation2 + $0x78] sm:$0xff]
    %73 = vmatprep.subr.mxu0 0.0
    %74 = vmatpush1.msra.mxu0 %v72
    %75 = vmatprep.subr.mxu0 0.0
    %76 = vmatpush1.msra.mxu0 %v71
    %77 = vmatprep.subr.mxu0 0.0
    %78 = vmatpush1.msra.mxu0 %v70
    %79 = vmatprep.subr.mxu0 0.0
    %80 = vmatpush1.msra.mxu0 %v69
    %81 = vmatprep.subr.mxu0 0.0
    %82 = vmatpush1.msra.mxu0 %v68
    %83 = vmatprep.subr.mxu0 0.0
    %84 = vmatpush1.msra.mxu0 %v67
    %85 = vmatprep.subr.mxu0 0.0
    %86 = vmatpush1.msra.mxu0 %v66
    %87 = vmatprep.subr.mxu0 0.0
    %88 = vmatpush1.msra.mxu0 %v65
    %89 = vmatprep.subr.mxu0 0.0
    %90 = vmatpush1.msra.mxu0 %v64
    %91 = vmatprep.subr.mxu0 0.0
    %92 = vmatpush1.msra.mxu0 %v63
    %93 = vmatprep.subr.mxu0 0.0
    %94 = vmatpush1.msra.mxu0 %v62
    %95 = vmatprep.subr.mxu0 0.0
    %96 = vmatpush1.msra.mxu0 %v61
    %97 = vmatprep.subr.mxu0 0.0
    %98 = vmatpush1.msra.mxu0 %v60
    %99 = vmatprep.subr.mxu0 0.0
    %100 = vmatpush1.msra.mxu0 %v59
    %101 = vmatprep.subr.mxu0 0.0
    %102 = vmatpush1.msra.mxu0 %v58
    %103 = vmatprep.subr.mxu0 0.0
    %104 = vmatpush1.msra.mxu0 %v57
    %105 = vmatprep.subr.mxu0 0.0
    %106 = vmatpush2.msra.mxu0 0.0
    %107 = vmatprep.subr.mxu0 0.0
    %108 = vmatpush2.msra.mxu0 0.0
    %109 = vmatprep.subr.mxu0 0.0
    %110 = vmatpush2.msra.mxu0 0.0
    %111 = vmatprep.subr.mxu0 0.0
    %112 = vmatpush2.msra.mxu0 0.0
    %113 = vmatprep.subr.mxu0 0.0
    %114 = vmatpush2.msra.mxu0 0.0
    %115 = vmatprep.subr.mxu0 0.0
    %116 = vmatpush2.msra.mxu0 0.0
    %117 = vmatprep.subr.mxu0 0.0
    %118 = vmatpush2.msra.mxu0 0.0
    %119 = vmatprep.subr.mxu0 0.0
    %120 = vmatpush2.msra.mxu0 0.0
    %121 = vmatprep.subr.mxu0 0.0
    %122 = vmatpush2.msra.mxu0 0.0
    %123 = vmatprep.subr.mxu0 0.0
    %124 = vmatpush2.msra.mxu0 0.0
    %125 = vmatprep.subr.mxu0 0.0
    %126 = vmatpush2.msra.mxu0 0.0
    %127 = vmatprep.subr.mxu0 0.0
    %128 = vmatpush2.msra.mxu0 0.0
    %129 = vmatprep.subr.mxu0 0.0
    %130 = vmatpush2.msra.mxu0 0.0
    %131 = vmatprep.subr.mxu0 0.0
    %132 = vmatpush2.msra.mxu0 0.0
    %133 = vmatprep.subr.mxu0 0.0
    %134 = vmatpush2.msra.mxu0 0.0
    %135 = vmatprep.subr.mxu0 0.0
    %136 = vmatpush2.msra.mxu0 0.0
    %137 = vmatprep.mubr.f32.mxu0 0.0
    %138 = vmatmul.mubr.f32.gmra.mxu0 %v55
    %v139 = vpop.f32.mrf.mxu0
    %v140 = vadd.f32 0.0, %v139
    %v141 = vpop.f32.mrf.mxu0
    %142 = vmatprep.mubr.f32.mxu0 0.0
    %143 = vmatmul.mubr.f32.gmra.mxu0 %v56
    %v144 = vpop.f32.mrf.mxu0
    %v145 = vadd.f32 0.0, %v144
    %v146 = vpop.f32.mrf.mxu0
    %147 = vdwg.mxu0
    %148 = vst [vmem:[#allocation5] sm:$0xff] %v140
    %149 = vst [vmem:[#allocation5 + $0x8] sm:$0xff] %v145
    %v150 = vlaneseq
    %v151 = vshrl.u32 %v150, 7
    %v152 = vadd.s32 %v151, 8
    %v153 = vstv %s32
    %v154 = vadd.s32 %v151, %v153
    %v155 = vadd.s32 %v152, %v153
    %vm156 = vcmp.lt.s32.totalorder %v154, 16
    %vm157 = vcmp.lt.s32.totalorder %v155, 16
    %vm158 = vcmp.lt.s32.totalorder %v44, 65
    %v159 = vsel %vm158, %v140, -1e+30
    %v160 = vsel %vm158, %v145, -1e+30
    %161 = vmax.xlane.f32.xlu0 %v159
    %v162 = vpop.xlane.xlu0 %161
    %163 = vmax.xlane.f32.xlu0 %v160
    %v164 = vpop.xlane.xlu0 %163
    %v165 = vsub.f32 %v159, %v162
    %v166 = vsub.f32 %v160, %v164
    %v167 = vmul.f32 %v165, 1.442695
    %v168 = vpow.pop %v167
    %v169 = vmul.f32 %v166, 1.442695
    %v170 = vpow.pop %v169
    %171 = vadd.xlane.f32.xlu0 %v168
    %v172 = vpop.xlane.xlu0 %171
    %173 = vadd.xlane.f32.xlu0 %v170
    %v174 = vpop.xlane.xlu0 %173
    %v175 = vlog2.pop %v172
    %v176 = vmul.f32 %v175, 0.6931472
    %v177 = vlog2.pop %v174
    %v178 = vmul.f32 %v177, 0.6931472
    %v179 = vadd.f32 %v176, %v162
    %v180 = vadd.f32 %v178, %v164
    %v181 = vld [vmem:[%s1] sm:$0xff]
    %v182 = vld [vmem:[%s1 + $0x8] sm:$0xff]
    %vm183 = vcmp.gt.s32.totalorder %v181, 0
    %v184 = vsel %vm183, %v181, 0
    %vm185 = vcmp.gt.s32.totalorder %v182, 0
    %v186 = vsel %vm185, %v182, 0
    %vm187 = vcmp.lt.s32.totalorder %v184, 64
    %v188 = vsel %vm187, %v184, 64
    %vm189 = vcmp.lt.s32.totalorder %v186, 64
    %v190 = vsel %vm189, %v186, 64
    %191 = vset.pattern.permute.xlu0 0
    %192 = vperm.xlu0 %191, %v188
    %v193 = vpop.permute.xlu0 %192
    %194 = vset.pattern.permute.xlu0 0
    %195 = vperm.xlu0 %194, %v190
    %v196 = vpop.permute.xlu0 %195
    %vm197 = vcmp.eq.s32.totalorder %v44, %v193
    %vm198 = vcmp.eq.s32.totalorder %v44, %v196
    %v199 = vsel %vm156, 1, 0
    %v200 = vsel %vm157, 1, 0
    %vm201 = vcmp.eq.s32.totalorder %v199, 1
    %vm202 = vcmp.eq.s32.totalorder %v200, 1
    %vm203 = vmand %vm197, %vm201
    %vm204 = vmand %vm198, %vm202
    %v205 = vsel %vm156, %v179, 0.0
    %v206 = vsel %vm157, %v180, 0.0
    %vm207 = vcmask 7168
    %v208 = vsel %vm207, %v205, 0.0
    %v209 = vsel %vm207, %v206, 0.0
    %v210 = vadd.f32 %v208, %v209
    %211 = vadd.xlane.f32.xlu0 %v210
    %v212 = vpop.xlane.xlu0 %211
    %v213 = vrot.slane %v212, 4
    %v214 = vadd.f32 %v212, %v213
    %v215 = vrot.slane %v214, 2
    %v216 = vadd.f32 %v214, %v215
    %v217 = vrot.slane %v216, 1
    %v218 = vadd.f32 %v216, %v217
    %s219 = vtos %v218
    %v220 = vsel %vm203, %v140, 0.0
    %v221 = vsel %vm204, %v145, 0.0
    %v222 = vadd.f32 %v220, %v221
    %223 = vadd.xlane.f32.xlu0 %v222
    %v224 = vpop.xlane.xlu0 %223
    %v225 = vrot.slane %v224, 4
    %v226 = vadd.f32 %v224, %v225
    %v227 = vrot.slane %v226, 2
    %v228 = vadd.f32 %v226, %v227
    %v229 = vrot.slane %v228, 1
    %v230 = vadd.f32 %v228, %v229
    %s231 = vtos %v230
    %s232 = ssub.f32 %s219, %s231
    %v233 = vstv %s232
    %v234 = vadd.f32 %v233, 0.0
    %235 = vst [vmem:[#allocation6] sm:$0xff] %v234
    // Predicated region
    $region18: #{tpu_custom_call.1} parent=1 // pred_check
      _
    $region19: #{tpu_custom_call.1} parent=1 // pred_check_branch
      %237 = sbr.rel (0) target = $region21
    $region20: #{tpu_custom_call.1} parent=1 // pred_region
      %s239 = ssub.s32 256, 256
      %240 = vsyncadd [#allocation4], %s239
      %s241 = sshll.u32 [#allocation5], 4
      %s242 = int_to_ptr.vmem [resolvable:$true] %s241
      %247 = dma.vmem_to_hbm [thread:$0]  %s242, 256, %s3, [#allocation4], 128, 128, 8
    $region21: #{tpu_custom_call.1} parent=1 // pred_fallthru
      _
    // Predicated region
    $region22: #{tpu_custom_call.1} parent=1 // pred_check
      _
    $region23: #{tpu_custom_call.1} parent=1 // pred_check_branch
      %249 = sbr.rel (0) target = $region25
    $region24: #{tpu_custom_call.1} parent=1 // pred_region
      %s251 = ssub.s32 128, 128
      %252 = vsyncadd [#allocation7], %s251
      %s254 = sshll.u32 [#allocation6], 4
      %s255 = int_to_ptr.vmem [resolvable:$true] %s254
      %257 = dma.vmem_to_hbm [thread:$0]  %s255, 128, %s4, [#allocation7]
    $region25: #{tpu_custom_call.1} parent=1 // pred_fallthru
      _
    // Predicated region
    $region26: #{tpu_custom_call.1} parent=1 // pred_check
      _
    $region27: #{tpu_custom_call.1} parent=1 // pred_check_branch
      %259 = sbr.rel (0) target = $region29
    $region28: #{tpu_custom_call.1} parent=1 // pred_region
      %260 = dma.done [#allocation4], 256
    $region29: #{tpu_custom_call.1} parent=1 // pred_fallthru
      _
    // Predicated region
    $region30: #{tpu_custom_call.1} parent=1 // pred_check
      _
    $region31: #{tpu_custom_call.1} parent=1 // pred_check_branch
      %262 = sbr.rel (0) target = $region33
    $region32: #{tpu_custom_call.1} parent=1 // pred_region
      %263 = dma.done [#allocation7], 128
    $region33: #{tpu_custom_call.1} parent=1 // pred_fallthru
      _
    %264 = vsyncpa [#allocation3], 1
    %265 = vsyncpa [#allocation4], 1
    %266 = vsyncpa [#allocation7], 1

</llo_original>
